<compile_context>
chip_gen: v7x
topology: tpu7x:2x2x1
jax: 0.10.0
libtpu: 0.0.40
codegen_flags: <defaults>
</compile_context>

<pallas_src>
import numpy as np
import jax
import jax.numpy as jnp
from jax.experimental import pallas as pl
from jax.experimental.pallas import tpu as pltpu


def _round_up(v, m):
    return ((v + m - 1) // m) * m


def _pick_divisor_tile(total, preferred=(512, 256, 128)):
    """Largest preferred tile that exactly divides `total` (total % 128 == 0)."""
    for t in preferred:
        if t <= total and total % t == 0:
            return t
    return total


# ---------------- stage 1: support = x @ W  (f32 compute, bf16 store) --------
def _support_kernel(x_ref, w_ref, o_ref, acc_ref):
    kf = pl.program_id(1)

    @pl.when(kf == 0)
    def _():
        acc_ref[...] = jnp.zeros_like(acc_ref)

    acc_ref[...] += jnp.dot(x_ref[...], w_ref[...],
                            preferred_element_type=jnp.float32)

    @pl.when(kf == pl.num_programs(1) - 1)
    def _():
        o_ref[...] = acc_ref[...].astype(o_ref.dtype)


# ---------------- stage 2: out = relu(adj @ support (+ bias)) ----------------
def _make_stage2_kernel(tk, resident, has_bias):
    """Builds the stage-2 kernel.

    tk:       reduction tile size (columns of adj per grid step).
    resident: support block is the full (Np_k, Hp) array, slice with pl.ds.
    has_bias: add the broadcast bias row on finalize.
    """

    def body(adj_ref, sup_ref, b_ref, o_ref, acc_ref):
        k = pl.program_id(1)

        @pl.when(k == 0)
        def _():
            acc_ref[...] = jnp.zeros_like(acc_ref)

        # Cast to bf16 right before the MXU (no-op if adj already bf16); this
        # lets unpadded f32 adj stream straight from HBM with no pre-pass.
        a = adj_ref[...].astype(jnp.bfloat16)
        if resident:
            off = pl.multiple_of(k * tk, tk)
            s = sup_ref[pl.ds(off, tk), :]
        else:
            s = sup_ref[...]
        acc_ref[...] += jnp.dot(a, s, preferred_element_type=jnp.float32)

        @pl.when(k == pl.num_programs(1) - 1)
        def _():
            r = acc_ref[...]
            if has_bias:
                r = r + b_ref[...]
            o_ref[...] = jnp.maximum(r, 0.0).astype(o_ref.dtype)

    if has_bias:
        def kernel(adj_ref, sup_ref, b_ref, o_ref, acc_ref):
            body(adj_ref, sup_ref, b_ref, o_ref, acc_ref)
    else:
        def kernel(adj_ref, sup_ref, o_ref, acc_ref):
            body(adj_ref, sup_ref, None, o_ref, acc_ref)
    return kernel


def gcn_forward(adj, x, w, bias=None):
    """GCN forward: relu(adj @ (x @ w) [+ bias]).

    adj: [N, N] (dense; f32 or bf16), x: [N, F], w: [F, H], bias: [H] or None.
    """
    N, F = x.shape
    H = w.shape[1]
    f32, bf16 = jnp.float32, jnp.bfloat16

    # --- tile sizes (MXU / lane aligned, adaptive for small shapes) ----------
    if N >= 1024:
        TM = 512                       # keeps >=2 row tiles for megacore
    elif N >= 512:
        TM = 256
    else:
        TM = _round_up(N, 16)          # 16: bf16 sublane packing
    if N >= 2048:
        TK = 1024
    elif N >= 512:
        TK = 512
    else:
        TK = _round_up(N, 128)

    Np_r = _round_up(N, TM)            # padded rows of adj / out
    Np_k = _round_up(N, TK)            # padded reduction dim
    Fp = _round_up(F, 128)
    Hp = _round_up(H, 128)             # lane-dense output width
    TMS = _pick_divisor_tile(Np_k)     # stage-1 row tile
    TKF = _pick_divisor_tile(Fp)       # stage-1 reduction tile

    # --- stage-1 operands: pad only when needed (zero pad preserves math) ----
    x32 = x.astype(f32)
    x_p = x32 if (N, F) == (Np_k, Fp) else (
        jnp.zeros((Np_k, Fp), f32).at[:N, :F].set(x32))
    w32 = w.astype(f32)
    w_p = w32 if (F, H) == (Fp, Hp) else (
        jnp.zeros((Fp, Hp), f32).at[:F, :H].set(w32))

    # --- stage 1: support = x @ w (K-tiled accumulator, bf16 store) ----------
    support = pl.pallas_call(
        _support_kernel,
        out_shape=jax.ShapeDtypeStruct((Np_k, Hp), bf16),
        grid_spec=pltpu.PrefetchScalarGridSpec(
            num_scalar_prefetch=0,
            grid=(Np_k // TMS, Fp // TKF),
            in_specs=[
                pl.BlockSpec((TMS, TKF), lambda i, kf: (i, kf)),
                pl.BlockSpec((TKF, Hp), lambda i, kf: (kf, 0)),
            ],
            out_specs=pl.BlockSpec((TMS, Hp), lambda i, kf: (i, 0)),
            scratch_shapes=[pltpu.VMEM((TMS, Hp), jnp.float32)]),
        compiler_params=pltpu.CompilerParams(
            dimension_semantics=("parallel", "arbitrary")),
        cost_estimate=pl.CostEstimate(
            flops=2 * Np_k * Fp * Hp,
            transcendentals=0,
            bytes_accessed=4 * Np_k * Fp
                           + 4 * Fp * Hp * (Np_k // TMS)
                           + 2 * Np_k * Hp),
    )(x_p, w_p)

    # --- stage-2 adj: no pre-pass when aligned (cast in-kernel); else pad ----
    if (N, N) == (Np_r, Np_k):
        adj_in = adj                                  # native dtype stream
    else:
        adj_in = jnp.zeros((Np_r, Np_k), bf16).at[:N, :N].set(adj.astype(bf16))
    adj_bytes = adj_in.dtype.itemsize

    # --- support residency decision (2 buffers, bf16, conservative) ----------
    resident = (2 * Np_k * Hp * 2) <= (12 << 20)

    grid = (Np_r // TM, Np_k // TK)
    adj_spec = pl.BlockSpec((TM, TK), lambda i, k: (i, k))
    if resident:
        sup_spec = pl.BlockSpec((Np_k, Hp), lambda i, k: (0, 0))
    else:
        sup_spec = pl.BlockSpec((TK, Hp), lambda i, k: (k, 0))
    out_spec = pl.BlockSpec((TM, Hp), lambda i, k: (i, 0))
    scratch = [pltpu.VMEM((TM, Hp), f32)]

    sup_stream_bytes = (Np_k * Hp * 2 if resident
                        else (Np_r // TM) * Np_k * Hp * 2)
    cost = pl.CostEstimate(
        flops=2 * Np_r * Np_k * Hp,
        transcendentals=0,
        bytes_accessed=adj_bytes * Np_r * Np_k + sup_stream_bytes
                       + 4 * Np_r * Hp)

    vmem_need = (2 * TM * TK * adj_bytes                       # adj dbl-buf
                 + (2 * Np_k * Hp * 2 if resident else 2 * TK * Hp * 2)
                 + 3 * TM * Hp * 4                             # acc + out bufs
                 + 2 * Hp * 4)
    vmem_limit = int(min(max(32 << 20, 3 * vmem_need // 2), 56 << 20))
    cparams = pltpu.CompilerParams(
        dimension_semantics=("parallel", "arbitrary"),
        vmem_limit_bytes=vmem_limit)

    has_bias = bias is not None
    kernel = _make_stage2_kernel(TK, resident, has_bias)
    in_specs = [adj_spec, sup_spec]
    args = [adj_in, support]
    if has_bias:
        b_p = jnp.zeros((1, Hp), f32).at[0, :H].set(bias.astype(f32).reshape(H))
        in_specs.append(pl.BlockSpec((1, Hp), lambda i, k: (0, 0)))
        args.append(b_p)

    out_p = pl.pallas_call(
        kernel,
        out_shape=jax.ShapeDtypeStruct((Np_r, Hp), f32),
        grid_spec=pltpu.PrefetchScalarGridSpec(
            num_scalar_prefetch=0,
            grid=grid,
            in_specs=in_specs,
            out_specs=out_spec,
            scratch_shapes=scratch),
        compiler_params=cparams,
        cost_estimate=cost,
    )(*args)

    if (Np_r, Hp) == (N, H):
        return out_p
    return out_p[:N, :H]


def _reference(adj, x, w, bias):
    # Matches kernel semantics: f32 x@W, bf16 MXU inputs, f32 accumulate.
    support = (x @ w).astype(jnp.bfloat16)
    out = jnp.dot(adj.astype(jnp.bfloat16), support,
                  preferred_element_type=jnp.float32)
    if bias is not None:
        out = out + bias
    return jnp.maximum(out, 0.0)


if __name__ == "__main__":
    key = jax.random.PRNGKey(0)

    # --- test 1: small shapes consistent with the module (padded path) -------
    N, nfeat, nhid = 8, 16, 32
    k_adj, k_x, k_w, k_b = jax.random.split(key, 4)

    bound = float(np.sqrt(6.0 / (nfeat + nhid)))      # xavier_uniform
    w = jax.random.uniform(k_w, (nfeat, nhid), jnp.float32, -bound, bound)
    adj_raw = jax.random.uniform(k_adj, (N, N), jnp.float32)
    adj = adj_raw / jnp.sum(adj_raw, axis=1, keepdims=True)
    x = jax.random.normal(k_x, (N, nfeat), jnp.float32)

    # isBias=False (module default)
    out = jax.block_until_ready(gcn_forward(adj, x, w, None))
    np.testing.assert_allclose(np.asarray(out), np.asarray(_reference(adj, x, w, None)),
                               rtol=1e-2, atol=2e-2)

    # isBias=True path
    bias = 0.1 * jax.random.normal(k_b, (nhid,), jnp.float32)
    out_b = jax.block_until_ready(gcn_forward(adj, x, w, bias))
    np.testing.assert_allclose(np.asarray(out_b), np.asarray(_reference(adj, x, w, bias)),
                               rtol=1e-2, atol=2e-2)

    # --- test 2: tile-aligned shapes (no pad pre-pass, resident support, -----
    # --- in-kernel f32->bf16 adj cast) ----------------------------------------
    N2, F2, H2 = 256, 128, 64
    k_adj2, k_x2, k_w2 = jax.random.split(jax.random.PRNGKey(1), 3)
    bound2 = float(np.sqrt(6.0 / (F2 + H2)))
    w2 = jax.random.uniform(k_w2, (F2, H2), jnp.float32, -bound2, bound2)
    adj2_raw = jax.random.uniform(k_adj2, (N2, N2), jnp.float32)
    adj2 = adj2_raw / jnp.sum(adj2_raw, axis=1, keepdims=True)
    x2 = jax.random.normal(k_x2, (N2, F2), jnp.float32)

    out2 = jax.block_until_ready(gcn_forward(adj2, x2, w2, None))
    np.testing.assert_allclose(np.asarray(out2),
                               np.asarray(_reference(adj2, x2, w2, None)),
                               rtol=1e-2, atol=2e-2)

    print("KERNEL_OK")
</pallas_src>

<mosaic_0001>
module attributes {stable_mosaic.version = 11 : i64} {
  func.func @_support_kernel(%arg0: i32, %arg1: i32, %arg2: memref<128x128xf32, #tpu.memory_space<vmem>>, %arg3: memref<128x128xf32, #tpu.memory_space<vmem>>, %arg4: memref<128x128xbf16, #tpu.memory_space<vmem>>, %arg5: memref<128x128xf32, #tpu.memory_space<vmem>>) attributes {dimension_semantics = [#tpu.dimension_semantics<parallel>, #tpu.dimension_semantics<arbitrary>], iteration_bounds = array<i64: 1, 1>, scalar_prefetch = 0 : i64, scratch_operands = 1 : i64, tpu.core_type = #tpu.core_type<tc>, window_params = [{transform_indices = @transform_0, window_bounds = array<i64: 128, 128>}, {transform_indices = @transform_1, window_bounds = array<i64: 128, 128>}, {transform_indices = @transform_2, window_bounds = array<i64: 128, 128>}]} {
    %c0_i32 = arith.constant 0 : i32
    %0 = arith.cmpi eq, %arg1, %c0_i32 : i32
    %1 = arith.extui %0 : i1 to i32
    %c0_i32_0 = arith.constant 0 : i32
    %2 = arith.cmpi ne, %1, %c0_i32_0 : i32
    scf.if %2 {
      %cst_10 = arith.constant 0.000000e+00 : f32
      %12 = vector.broadcast %cst_10 : f32 to vector<128x128xf32>
      %c0_11 = arith.constant 0 : index
      %c0_12 = arith.constant 0 : index
      %13 = vector.load %arg5[%c0_11, %c0_12] : memref<128x128xf32, #tpu.memory_space<vmem>>, vector<128x128xf32>
      tpu.vector_store %arg5[%c0_11, %c0_12], %12 {strides = array<i32>} : memref<128x128xf32, #tpu.memory_space<vmem>>, vector<128x128xf32>,
    } else {
    }
    %c0 = arith.constant 0 : index
    %c0_1 = arith.constant 0 : index
    %3 = vector.load %arg5[%c0, %c0_1] : memref<128x128xf32, #tpu.memory_space<vmem>>, vector<128x128xf32>
    %c0_2 = arith.constant 0 : index
    %c0_3 = arith.constant 0 : index
    %4 = vector.load %arg2[%c0_2, %c0_3] : memref<128x128xf32, #tpu.memory_space<vmem>>, vector<128x128xf32>
    %c0_4 = arith.constant 0 : index
    %c0_5 = arith.constant 0 : index
    %5 = vector.load %arg3[%c0_4, %c0_5] : memref<128x128xf32, #tpu.memory_space<vmem>>, vector<128x128xf32>
    %cst = arith.constant dense<0.000000e+00> : vector<128x128xf32>
    %6 = tpu.matmul %4, %5, %cst {dimension_numbers = #tpu.dot_dimension_numbers<[1], [0], [0], [1], [0, 0, 1, 1], [], []>} : vector<128x128xf32>, vector<128x128xf32>, vector<128x128xf32> -> vector<128x128xf32>
    %7 = arith.addf %3, %6 : vector<128x128xf32>
    %c0_6 = arith.constant 0 : index
    %c0_7 = arith.constant 0 : index
    %8 = vector.load %arg5[%c0_6, %c0_7] : memref<128x128xf32, #tpu.memory_space<vmem>>, vector<128x128xf32>
    tpu.vector_store %arg5[%c0_6, %c0_7], %7 {strides = array<i32>} : memref<128x128xf32, #tpu.memory_space<vmem>>, vector<128x128xf32>,
    %c0_i32_8 = arith.constant 0 : i32
    %9 = arith.cmpi eq, %arg1, %c0_i32_8 : i32
    %10 = arith.extui %9 : i1 to i32
    %c0_i32_9 = arith.constant 0 : i32
    %11 = arith.cmpi ne, %10, %c0_i32_9 : i32
    scf.if %11 {
      %c0_10 = arith.constant 0 : index
      %c0_11 = arith.constant 0 : index
      %12 = vector.load %arg5[%c0_10, %c0_11] : memref<128x128xf32, #tpu.memory_space<vmem>>, vector<128x128xf32>
      %13 = arith.truncf %12 : vector<128x128xf32> to vector<128x128xbf16>
      %c0_12 = arith.constant 0 : index
      %c0_13 = arith.constant 0 : index
      %14 = vector.load %arg4[%c0_12, %c0_13] : memref<128x128xbf16, #tpu.memory_space<vmem>>, vector<128x128xbf16>
      tpu.vector_store %arg4[%c0_12, %c0_13], %13 {strides = array<i32>} : memref<128x128xbf16, #tpu.memory_space<vmem>>, vector<128x128xbf16>,
    } else {
    }
    return
  }
  func.func @transform_0(%arg0: i32, %arg1: i32) -> (i32, i32) {
    %c0_i32 = arith.constant 0 : i32
    return %arg0, %arg1 : i32, i32
  }
  func.func @transform_1(%arg0: i32, %arg1: i32) -> (i32, i32) {
    %c0_i32 = arith.constant 0 : i32
    %c0_i32_0 = arith.constant 0 : i32
    return %arg1, %c0_i32 : i32, i32
  }
  func.func @transform_2(%arg0: i32, %arg1: i32) -> (i32, i32) {
    %c0_i32 = arith.constant 0 : i32
    %c0_i32_0 = arith.constant 0 : i32
    return %arg0, %c0_i32 : i32, i32
  }
}

</mosaic_0001>

<llo_original>
// kernel: tpu_custom_call.1
$region0: #{tpu_custom_call.1}
  #allocation0 [shape = 'u32[]', space=smem, size = 0x4, offset = 0x4, fixed_abs, tag = 'smem constant byte address 0x4 - core index']
  #allocation1 [shape = 'u32[144,128]{1,0:T(1,128)}', space=vmem, size = 0x12000, scoped, tag = 'internal scratch']
  #allocation2 [shape = 'f32[128,128]{1,0:T(8,128)}', space=vmem, size = 0x10000, scoped, tag = 'scratch operand']
  %s0 = inlined_call_operand.hbm [shape: f32[128,128], index: 0, kind: input, shape index: {}]
  %s1 = inlined_call_operand.hbm [shape: f32[128,128], index: 1, kind: input, shape index: {}]
  %s2 = inlined_call_operand.hbm [shape: bf16[128,128], index: 2, kind: output, shape index: {}]
  %s3 = sld [smem:[#allocation0]]
  $region34: #{tpu_custom_call.1} parent=0
    _
  %s5 = ssub.s32 1, %s3
  %s6 = scalar_select 0, %s5, %s3
  $region1: #{tpu_custom_call.1} parent=0
    #allocation3 [shape = 'u8[65536]{0}', space=vmem, size = 0x10000, scoped, tag = 'input window, operand 0, single buffered']
    #allocation4 [shape = 's32[1]{0}', space=sflag, size = 0x4, scoped, tag = 'scoped memory for tpu_custom_call.1']
    #allocation5 [shape = 's32[1]{0}', space=sflag, size = 0x4, scoped, tag = 'scoped memory for tpu_custom_call.1']
    #allocation6 [shape = 'u8[65536]{0}', space=vmem, size = 0x10000, scoped, tag = 'input window, operand 1, single buffered']
    #allocation7 [shape = 's32[1]{0}', space=sflag, size = 0x4, scoped, tag = 'scoped memory for tpu_custom_call.1']
    #allocation8 [shape = 'u8[32768]{0}', space=vmem, size = 0x8000, scoped, tag = 'output window, operand 0, single buffered']
    %7 = vsyncpa [#allocation4], 0
    %8 = vsyncpa [#allocation7], 0
    %9 = vsyncpa [#allocation5], 0
    // Predicated region
    $region2: #{tpu_custom_call.1} parent=1 // pred_check
      _
    $region3: #{tpu_custom_call.1} parent=1 // pred_check_branch
      %11 = sbr.rel (0) target = $region5
    $region4: #{tpu_custom_call.1} parent=1 // pred_region
      %s13 = ssub.s32 2048, 2048
      %14 = vsyncadd [#allocation4], %s13
      %s15 = sshll.u32 [#allocation3], 4
      %s16 = int_to_ptr.vmem [resolvable:$true] %s15
      %21 = dma.hbm_to_vmem [thread:$0]  %s0, 2048, %s16, [#allocation4], 128, 128, 8
    $region5: #{tpu_custom_call.1} parent=1 // pred_fallthru
      _
    // Predicated region
    $region6: #{tpu_custom_call.1} parent=1 // pred_check
      _
    $region7: #{tpu_custom_call.1} parent=1 // pred_check_branch
      %23 = sbr.rel (0) target = $region9
    $region8: #{tpu_custom_call.1} parent=1 // pred_region
      %s25 = ssub.s32 2048, 2048
      %26 = vsyncadd [#allocation7], %s25
      %s27 = sshll.u32 [#allocation6], 4
      %s28 = int_to_ptr.vmem [resolvable:$true] %s27
      %33 = dma.hbm_to_vmem [thread:$0]  %s1, 2048, %s28, [#allocation7], 128, 128, 8
    $region9: #{tpu_custom_call.1} parent=1 // pred_fallthru
      _
    // Predicated region
    $region10: #{tpu_custom_call.1} parent=1 // pred_check
      _
    $region11: #{tpu_custom_call.1} parent=1 // pred_check_branch
      %35 = sbr.rel (0) target = $region13
    $region12: #{tpu_custom_call.1} parent=1 // pred_region
      %36 = dma.done [#allocation4], 2048
    $region13: #{tpu_custom_call.1} parent=1 // pred_fallthru
      _
    // Predicated region
    $region14: #{tpu_custom_call.1} parent=1 // pred_check
      _
    $region15: #{tpu_custom_call.1} parent=1 // pred_check_branch
      %38 = sbr.rel (0) target = $region17
    $region16: #{tpu_custom_call.1} parent=1 // pred_region
      %39 = dma.done [#allocation7], 2048
    $region17: #{tpu_custom_call.1} parent=1 // pred_fallthru
      _
    %p40 = scmp.eq.s32.totalorder 0, 0
    // Predicated region
    $region18: #{tpu_custom_call.1} parent=1 // pred_check
      %p41 = pneg %p40
    $region19: #{tpu_custom_call.1} parent=1 // pred_check_branch
      %43 = sbr.rel (%p41) target = $region21
    $region20: #{tpu_custom_call.1} parent=1 // pred_region
      %44 = vst [vmem:[#allocation2] sm:$0xff] 0.0
      %45 = vst [vmem:[#allocation2 + $0x8] sm:$0xff] 0.0
      %46 = vst [vmem:[#allocation2 + $0x10] sm:$0xff] 0.0
      %47 = vst [vmem:[#allocation2 + $0x18] sm:$0xff] 0.0
      %48 = vst [vmem:[#allocation2 + $0x20] sm:$0xff] 0.0
      %49 = vst [vmem:[#allocation2 + $0x28] sm:$0xff] 0.0
      %50 = vst [vmem:[#allocation2 + $0x30] sm:$0xff] 0.0
      %51 = vst [vmem:[#allocation2 + $0x38] sm:$0xff] 0.0
      %52 = vst [vmem:[#allocation2 + $0x40] sm:$0xff] 0.0
      %53 = vst [vmem:[#allocation2 + $0x48] sm:$0xff] 0.0
      %54 = vst [vmem:[#allocation2 + $0x50] sm:$0xff] 0.0
      %55 = vst [vmem:[#allocation2 + $0x58] sm:$0xff] 0.0
      %56 = vst [vmem:[#allocation2 + $0x60] sm:$0xff] 0.0
      %57 = vst [vmem:[#allocation2 + $0x68] sm:$0xff] 0.0
      %58 = vst [vmem:[#allocation2 + $0x70] sm:$0xff] 0.0
      %59 = vst [vmem:[#allocation2 + $0x78] sm:$0xff] 0.0
    $region21: #{tpu_custom_call.1} parent=1 // pred_fallthru
      _
    %v60 = vld [vmem:[#allocation2] sm:$0xff]
    %v61 = vld [vmem:[#allocation2 + $0x8] sm:$0xff]
    %v62 = vld [vmem:[#allocation2 + $0x10] sm:$0xff]
    %v63 = vld [vmem:[#allocation2 + $0x18] sm:$0xff]
    %v64 = vld [vmem:[#allocation2 + $0x20] sm:$0xff]
    %v65 = vld [vmem:[#allocation2 + $0x28] sm:$0xff]
    %v66 = vld [vmem:[#allocation2 + $0x30] sm:$0xff]
    %v67 = vld [vmem:[#allocation2 + $0x38] sm:$0xff]
    %v68 = vld [vmem:[#allocation2 + $0x40] sm:$0xff]
    %v69 = vld [vmem:[#allocation2 + $0x48] sm:$0xff]
    %v70 = vld [vmem:[#allocation2 + $0x50] sm:$0xff]
    %v71 = vld [vmem:[#allocation2 + $0x58] sm:$0xff]
    %v72 = vld [vmem:[#allocation2 + $0x60] sm:$0xff]
    %v73 = vld [vmem:[#allocation2 + $0x68] sm:$0xff]
    %v74 = vld [vmem:[#allocation2 + $0x70] sm:$0xff]
    %v75 = vld [vmem:[#allocation2 + $0x78] sm:$0xff]
    %v76 = vld [vmem:[#allocation3] sm:$0xff]
    %v77 = vld [vmem:[#allocation3 + $0x8] sm:$0xff]
    %v78 = vld [vmem:[#allocation3 + $0x10] sm:$0xff]
    %v79 = vld [vmem:[#allocation3 + $0x18] sm:$0xff]
    %v80 = vld [vmem:[#allocation3 + $0x20] sm:$0xff]
    %v81 = vld [vmem:[#allocation3 + $0x28] sm:$0xff]
    %v82 = vld [vmem:[#allocation3 + $0x30] sm:$0xff]
    %v83 = vld [vmem:[#allocation3 + $0x38] sm:$0xff]
    %v84 = vld [vmem:[#allocation3 + $0x40] sm:$0xff]
    %v85 = vld [vmem:[#allocation3 + $0x48] sm:$0xff]
    %v86 = vld [vmem:[#allocation3 + $0x50] sm:$0xff]
    %v87 = vld [vmem:[#allocation3 + $0x58] sm:$0xff]
    %v88 = vld [vmem:[#allocation3 + $0x60] sm:$0xff]
    %v89 = vld [vmem:[#allocation3 + $0x68] sm:$0xff]
    %v90 = vld [vmem:[#allocation3 + $0x70] sm:$0xff]
    %v91 = vld [vmem:[#allocation3 + $0x78] sm:$0xff]
    %v92 = vld [vmem:[#allocation6] sm:$0xff]
    %v93 = vld [vmem:[#allocation6 + $0x8] sm:$0xff]
    %v94 = vld [vmem:[#allocation6 + $0x10] sm:$0xff]
    %v95 = vld [vmem:[#allocation6 + $0x18] sm:$0xff]
    %v96 = vld [vmem:[#allocation6 + $0x20] sm:$0xff]
    %v97 = vld [vmem:[#allocation6 + $0x28] sm:$0xff]
    %v98 = vld [vmem:[#allocation6 + $0x30] sm:$0xff]
    %v99 = vld [vmem:[#allocation6 + $0x38] sm:$0xff]
    %v100 = vld [vmem:[#allocation6 + $0x40] sm:$0xff]
    %v101 = vld [vmem:[#allocation6 + $0x48] sm:$0xff]
    %v102 = vld [vmem:[#allocation6 + $0x50] sm:$0xff]
    %v103 = vld [vmem:[#allocation6 + $0x58] sm:$0xff]
    %v104 = vld [vmem:[#allocation6 + $0x60] sm:$0xff]
    %v105 = vld [vmem:[#allocation6 + $0x68] sm:$0xff]
    %v106 = vld [vmem:[#allocation6 + $0x70] sm:$0xff]
    %v107 = vld [vmem:[#allocation6 + $0x78] sm:$0xff]
    %108 = vmatprep.subr.mxu0 0.0
    %109 = vmatpush1.msra.mxu0 %v92
    %110 = vmatprep.subr.mxu0 0.0
    %111 = vmatpush1.msra.mxu0 %v93
    %112 = vmatprep.subr.mxu0 0.0
    %113 = vmatpush1.msra.mxu0 %v94
    %114 = vmatprep.subr.mxu0 0.0
    %115 = vmatpush1.msra.mxu0 %v95
    %116 = vmatprep.subr.mxu0 0.0
    %117 = vmatpush1.msra.mxu0 %v96
    %118 = vmatprep.subr.mxu0 0.0
    %119 = vmatpush1.msra.mxu0 %v97
    %120 = vmatprep.subr.mxu0 0.0
    %121 = vmatpush1.msra.mxu0 %v98
    %122 = vmatprep.subr.mxu0 0.0
    %123 = vmatpush1.msra.mxu0 %v99
    %124 = vmatprep.subr.mxu0 0.0
    %125 = vmatpush1.msra.mxu0 %v100
    %126 = vmatprep.subr.mxu0 0.0
    %127 = vmatpush1.msra.mxu0 %v101
    %128 = vmatprep.subr.mxu0 0.0
    %129 = vmatpush1.msra.mxu0 %v102
    %130 = vmatprep.subr.mxu0 0.0
    %131 = vmatpush1.msra.mxu0 %v103
    %132 = vmatprep.subr.mxu0 0.0
    %133 = vmatpush1.msra.mxu0 %v104
    %134 = vmatprep.subr.mxu0 0.0
    %135 = vmatpush1.msra.mxu0 %v105
    %136 = vmatprep.subr.mxu0 0.0
    %137 = vmatpush1.msra.mxu0 %v106
    %138 = vmatprep.subr.mxu0 0.0
    %139 = vmatpush1.msra.mxu0 %v107
    %140 = vmatprep.subr.mxu0 0.0
    %141 = vmatpush1.msra.mxu0 0.0
    %142 = vmatprep.subr.mxu0 0.0
    %143 = vmatpush1.msra.mxu0 0.0
    %144 = vmatprep.subr.mxu0 0.0
    %145 = vmatpush1.msra.mxu0 0.0
    %146 = vmatprep.subr.mxu0 0.0
    %147 = vmatpush1.msra.mxu0 0.0
    %148 = vmatprep.subr.mxu0 0.0
    %149 = vmatpush1.msra.mxu0 0.0
    %150 = vmatprep.subr.mxu0 0.0
    %151 = vmatpush1.msra.mxu0 0.0
    %152 = vmatprep.subr.mxu0 0.0
    %153 = vmatpush1.msra.mxu0 0.0
    %154 = vmatprep.subr.mxu0 0.0
    %155 = vmatpush1.msra.mxu0 0.0
    %156 = vmatprep.subr.mxu0 0.0
    %157 = vmatpush1.msra.mxu0 0.0
    %158 = vmatprep.subr.mxu0 0.0
    %159 = vmatpush1.msra.mxu0 0.0
    %160 = vmatprep.subr.mxu0 0.0
    %161 = vmatpush1.msra.mxu0 0.0
    %162 = vmatprep.subr.mxu0 0.0
    %163 = vmatpush1.msra.mxu0 0.0
    %164 = vmatprep.subr.mxu0 0.0
    %165 = vmatpush1.msra.mxu0 0.0
    %166 = vmatprep.subr.mxu0 0.0
    %167 = vmatpush1.msra.mxu0 0.0
    %168 = vmatprep.subr.mxu0 0.0
    %169 = vmatpush1.msra.mxu0 0.0
    %170 = vmatprep.subr.mxu0 0.0
    %171 = vmatpush1.msra.mxu0 0.0
    %172 = vmatprep.mubr.f32.mxu0 0.0
    %173 = vmatmul.mubr.f32.gmra.mrb[0].mxu0 %v76
    %v174 = vpop.f32.mrb[0].mxu0
    %v175 = vadd.f32 0.0, %v174
    %v176 = vpop.f32.mrb[0].mxu0
    %177 = vmatprep.mubr.f32.mxu0 0.0
    %178 = vmatmul.mubr.f32.gmra.mrb[0].mxu0 %v77
    %v179 = vpop.f32.mrb[0].mxu0
    %v180 = vadd.f32 0.0, %v179
    %v181 = vpop.f32.mrb[0].mxu0
    %182 = vmatprep.mubr.f32.mxu0 0.0
    %183 = vmatmul.mubr.f32.gmra.mrb[0].mxu0 %v78
    %v184 = vpop.f32.mrb[0].mxu0
    %v185 = vadd.f32 0.0, %v184
    %v186 = vpop.f32.mrb[0].mxu0
    %187 = vmatprep.mubr.f32.mxu0 0.0
    %188 = vmatmul.mubr.f32.gmra.mrb[0].mxu0 %v79
    %v189 = vpop.f32.mrb[0].mxu0
    %v190 = vadd.f32 0.0, %v189
    %v191 = vpop.f32.mrb[0].mxu0
    %192 = vmatprep.mubr.f32.mxu0 0.0
    %193 = vmatmul.mubr.f32.gmra.mrb[0].mxu0 %v80
    %v194 = vpop.f32.mrb[0].mxu0
    %v195 = vadd.f32 0.0, %v194
    %v196 = vpop.f32.mrb[0].mxu0
    %197 = vmatprep.mubr.f32.mxu0 0.0
    %198 = vmatmul.mubr.f32.gmra.mrb[0].mxu0 %v81
    %v199 = vpop.f32.mrb[0].mxu0
    %v200 = vadd.f32 0.0, %v199
    %v201 = vpop.f32.mrb[0].mxu0
    %202 = vmatprep.mubr.f32.mxu0 0.0
    %203 = vmatmul.mubr.f32.gmra.mrb[0].mxu0 %v82
    %v204 = vpop.f32.mrb[0].mxu0
    %v205 = vadd.f32 0.0, %v204
    %v206 = vpop.f32.mrb[0].mxu0
    %207 = vmatprep.mubr.f32.mxu0 0.0
    %208 = vmatmul.mubr.f32.gmra.mrb[0].mxu0 %v83
    %v209 = vpop.f32.mrb[0].mxu0
    %v210 = vadd.f32 0.0, %v209
    %v211 = vpop.f32.mrb[0].mxu0
    %212 = vmatprep.mubr.f32.mxu0 0.0
    %213 = vmatmul.mubr.f32.gmra.mrb[0].mxu0 %v84
    %v214 = vpop.f32.mrb[0].mxu0
    %v215 = vadd.f32 0.0, %v214
    %v216 = vpop.f32.mrb[0].mxu0
    %217 = vmatprep.mubr.f32.mxu0 0.0
    %218 = vmatmul.mubr.f32.gmra.mrb[0].mxu0 %v85
    %v219 = vpop.f32.mrb[0].mxu0
    %v220 = vadd.f32 0.0, %v219
    %v221 = vpop.f32.mrb[0].mxu0
    %222 = vmatprep.mubr.f32.mxu0 0.0
    %223 = vmatmul.mubr.f32.gmra.mrb[0].mxu0 %v86
    %v224 = vpop.f32.mrb[0].mxu0
    %v225 = vadd.f32 0.0, %v224
    %v226 = vpop.f32.mrb[0].mxu0
    %227 = vmatprep.mubr.f32.mxu0 0.0
    %228 = vmatmul.mubr.f32.gmra.mrb[0].mxu0 %v87
    %v229 = vpop.f32.mrb[0].mxu0
    %v230 = vadd.f32 0.0, %v229
    %v231 = vpop.f32.mrb[0].mxu0
    %232 = vmatprep.mubr.f32.mxu0 0.0
    %233 = vmatmul.mubr.f32.gmra.mrb[0].mxu0 %v88
    %v234 = vpop.f32.mrb[0].mxu0
    %v235 = vadd.f32 0.0, %v234
    %v236 = vpop.f32.mrb[0].mxu0
    %237 = vmatprep.mubr.f32.mxu0 0.0
    %238 = vmatmul.mubr.f32.gmra.mrb[0].mxu0 %v89
    %v239 = vpop.f32.mrb[0].mxu0
    %v240 = vadd.f32 0.0, %v239
    %v241 = vpop.f32.mrb[0].mxu0
    %242 = vmatprep.mubr.f32.mxu0 0.0
    %243 = vmatmul.mubr.f32.gmra.mrb[0].mxu0 %v90
    %v244 = vpop.f32.mrb[0].mxu0
    %v245 = vadd.f32 0.0, %v244
    %v246 = vpop.f32.mrb[0].mxu0
    %247 = vmatprep.mubr.f32.mxu0 0.0
    %248 = vmatmul.mubr.f32.gmra.mrb[0].mxu0 %v91
    %v249 = vpop.f32.mrb[0].mxu0
    %v250 = vadd.f32 0.0, %v249
    %v251 = vpop.f32.mrb[0].mxu0
    %252 = vdwg.mxu0
    %v253 = vadd.f32 %v60, %v175
    %v254 = vadd.f32 %v61, %v180
    %v255 = vadd.f32 %v62, %v185
    %v256 = vadd.f32 %v63, %v190
    %v257 = vadd.f32 %v64, %v195
    %v258 = vadd.f32 %v65, %v200
    %v259 = vadd.f32 %v66, %v205
    %v260 = vadd.f32 %v67, %v210
    %v261 = vadd.f32 %v68, %v215
    %v262 = vadd.f32 %v69, %v220
    %v263 = vadd.f32 %v70, %v225
    %v264 = vadd.f32 %v71, %v230
    %v265 = vadd.f32 %v72, %v235
    %v266 = vadd.f32 %v73, %v240
    %v267 = vadd.f32 %v74, %v245
    %v268 = vadd.f32 %v75, %v250
    %269 = vst [vmem:[#allocation2] sm:$0xff] %v253
    %270 = vst [vmem:[#allocation2 + $0x8] sm:$0xff] %v254
    %271 = vst [vmem:[#allocation2 + $0x10] sm:$0xff] %v255
    %272 = vst [vmem:[#allocation2 + $0x18] sm:$0xff] %v256
    %273 = vst [vmem:[#allocation2 + $0x20] sm:$0xff] %v257
    %274 = vst [vmem:[#allocation2 + $0x28] sm:$0xff] %v258
    %275 = vst [vmem:[#allocation2 + $0x30] sm:$0xff] %v259
    %276 = vst [vmem:[#allocation2 + $0x38] sm:$0xff] %v260
    %277 = vst [vmem:[#allocation2 + $0x40] sm:$0xff] %v261
    %278 = vst [vmem:[#allocation2 + $0x48] sm:$0xff] %v262
    %279 = vst [vmem:[#allocation2 + $0x50] sm:$0xff] %v263
    %280 = vst [vmem:[#allocation2 + $0x58] sm:$0xff] %v264
    %281 = vst [vmem:[#allocation2 + $0x60] sm:$0xff] %v265
    %282 = vst [vmem:[#allocation2 + $0x68] sm:$0xff] %v266
    %283 = vst [vmem:[#allocation2 + $0x70] sm:$0xff] %v267
    %284 = vst [vmem:[#allocation2 + $0x78] sm:$0xff] %v268
    // Predicated region
    $region22: #{tpu_custom_call.1} parent=1 // pred_check
      %p285 = pneg %p40
    $region23: #{tpu_custom_call.1} parent=1 // pred_check_branch
      %287 = sbr.rel (%p285) target = $region25
    $region24: #{tpu_custom_call.1} parent=1 // pred_region
      %v288 = vld [vmem:[#allocation2] sm:$0xff]
      %v289 = vld [vmem:[#allocation2 + $0x8] sm:$0xff]
      %v290 = vld [vmem:[#allocation2 + $0x10] sm:$0xff]
      %v291 = vld [vmem:[#allocation2 + $0x18] sm:$0xff]
      %v292 = vld [vmem:[#allocation2 + $0x20] sm:$0xff]
      %v293 = vld [vmem:[#allocation2 + $0x28] sm:$0xff]
      %v294 = vld [vmem:[#allocation2 + $0x30] sm:$0xff]
      %v295 = vld [vmem:[#allocation2 + $0x38] sm:$0xff]
      %v296 = vld [vmem:[#allocation2 + $0x40] sm:$0xff]
      %v297 = vld [vmem:[#allocation2 + $0x48] sm:$0xff]
      %v298 = vld [vmem:[#allocation2 + $0x50] sm:$0xff]
      %v299 = vld [vmem:[#allocation2 + $0x58] sm:$0xff]
      %v300 = vld [vmem:[#allocation2 + $0x60] sm:$0xff]
      %v301 = vld [vmem:[#allocation2 + $0x68] sm:$0xff]
      %v302 = vld [vmem:[#allocation2 + $0x70] sm:$0xff]
      %v303 = vld [vmem:[#allocation2 + $0x78] sm:$0xff]
      %v304 = vpack.c.bf16 %v289, %v288
      %v305 = vpack.c.bf16 %v291, %v290
      %v306 = vpack.c.bf16 %v293, %v292
      %v307 = vpack.c.bf16 %v295, %v294
      %v308 = vpack.c.bf16 %v297, %v296
      %v309 = vpack.c.bf16 %v299, %v298
      %v310 = vpack.c.bf16 %v301, %v300
      %v311 = vpack.c.bf16 %v303, %v302
      %v320 = vunpack.c.l.b16 %v304
      %v321 = vunpack.c.h.b16 %v304
      %v322 = vunpack.c.l.b16 %v305
      %v323 = vunpack.c.h.b16 %v305
      %v324 = vunpack.c.l.b16 %v306
      %v325 = vunpack.c.h.b16 %v306
      %v326 = vunpack.c.l.b16 %v307
      %v327 = vunpack.c.h.b16 %v307
      %v328 = vunpack.c.l.b16 %v308
      %v329 = vunpack.c.h.b16 %v308
      %v330 = vunpack.c.l.b16 %v309
      %v331 = vunpack.c.h.b16 %v309
      %v332 = vunpack.c.l.b16 %v310
      %v333 = vunpack.c.h.b16 %v310
      %v334 = vunpack.c.l.b16 %v311
      %v335 = vunpack.c.h.b16 %v311
      %v336 = vpack.c.b16 %v320, %v320
      %v337 = vpack.c.b16 %v321, %v321
      %v338 = vpack.c.b16 %v322, %v322
      %v339 = vpack.c.b16 %v323, %v323
      %v340 = vpack.c.b16 %v324, %v324
      %v341 = vpack.c.b16 %v325, %v325
      %v342 = vpack.c.b16 %v326, %v326
      %v343 = vpack.c.b16 %v327, %v327
      %v344 = vpack.c.b16 %v328, %v328
      %v345 = vpack.c.b16 %v329, %v329
      %v346 = vpack.c.b16 %v330, %v330
      %v347 = vpack.c.b16 %v331, %v331
      %v348 = vpack.c.b16 %v332, %v332
      %v349 = vpack.c.b16 %v333, %v333
      %v350 = vpack.c.b16 %v334, %v334
      %v351 = vpack.c.b16 %v335, %v335
      %368 = vst [vmem:[#allocation8] sm:$0xf] %v336
      %369 = vst [vmem:[#allocation8 + $0x4] sm:$0xf] %v337
      %370 = vst [vmem:[#allocation8 + $0x8] sm:$0xf] %v338
      %371 = vst [vmem:[#allocation8 + $0xc] sm:$0xf] %v339
      %372 = vst [vmem:[#allocation8 + $0x10] sm:$0xf] %v340
      %373 = vst [vmem:[#allocation8 + $0x14] sm:$0xf] %v341
      %374 = vst [vmem:[#allocation8 + $0x18] sm:$0xf] %v342
      %375 = vst [vmem:[#allocation8 + $0x1c] sm:$0xf] %v343
      %376 = vst [vmem:[#allocation8 + $0x20] sm:$0xf] %v344
      %377 = vst [vmem:[#allocation8 + $0x24] sm:$0xf] %v345
      %378 = vst [vmem:[#allocation8 + $0x28] sm:$0xf] %v346
      %379 = vst [vmem:[#allocation8 + $0x2c] sm:$0xf] %v347
      %380 = vst [vmem:[#allocation8 + $0x30] sm:$0xf] %v348
      %381 = vst [vmem:[#allocation8 + $0x34] sm:$0xf] %v349
      %382 = vst [vmem:[#allocation8 + $0x38] sm:$0xf] %v350
      %383 = vst [vmem:[#allocation8 + $0x3c] sm:$0xf] %v351
    $region25: #{tpu_custom_call.1} parent=1 // pred_fallthru
      _
    // Predicated region
    $region26: #{tpu_custom_call.1} parent=1 // pred_check
      _
    $region27: #{tpu_custom_call.1} parent=1 // pred_check_branch
      %385 = sbr.rel (0) target = $region29
    $region28: #{tpu_custom_call.1} parent=1 // pred_region
      %s387 = ssub.s32 1024, 1024
      %388 = vsyncadd [#allocation5], %s387
      %s389 = sshll.u32 [#allocation8], 4
      %s390 = int_to_ptr.vmem [resolvable:$true] %s389
      %395 = dma.vmem_to_hbm [thread:$0]  %s390, 1024, %s2, [#allocation5], 64, 64, 4
    $region29: #{tpu_custom_call.1} parent=1 // pred_fallthru
      _
    // Predicated region
    $region30: #{tpu_custom_call.1} parent=1 // pred_check
      _
    $region31: #{tpu_custom_call.1} parent=1 // pred_check_branch
      %397 = sbr.rel (0) target = $region33
    $region32: #{tpu_custom_call.1} parent=1 // pred_region
      %398 = dma.done [#allocation5], 1024
    $region33: #{tpu_custom_call.1} parent=1 // pred_fallthru
      _
    %399 = vsyncpa [#allocation4], 1
    %400 = vsyncpa [#allocation7], 1
    %401 = vsyncpa [#allocation5], 1

</llo_original>
